<compile_context>
chip_gen: v7x
topology: tpu7x:2x2x1
jax: 0.10.0
libtpu: 0.0.40
codegen_flags: <defaults>
</compile_context>

<pallas_src>
import jax
import jax.numpy as jnp
from jax.experimental import pallas as pl
from jax.experimental.pallas import tpu as pltpu


def _ae_kernel(x_ref, w1_ref, b1_ref, w2_ref, w3_ref, b3_ref, enc_ref, dec_ref):
    # Cast the streamed f32 x tile to bf16 on the VPU (MXU-native operand).
    x = x_ref[...].astype(jnp.bfloat16)

    # Encoder layer 1: Linear(D0 -> D1) + bias + ReLU.  bf16 operands, f32 acc.
    h = jnp.dot(x, w1_ref[...], preferred_element_type=jnp.float32)
    h = jnp.maximum(h + b1_ref[...], 0.0)          # implicit (1,D1)->(TM,D1) bcast

    # Encoder layer 2: Linear(D1 -> E), no bias, then ReLU (kwta=None path).
    e = jnp.dot(h.astype(w2_ref.dtype), w2_ref[...],
                preferred_element_type=jnp.float32)
    e = jnp.maximum(e, 0.0)
    enc_ref[...] = e.astype(enc_ref.dtype)

    # Decoder: Linear(E -> D0) + bias.
    d = jnp.dot(e.astype(w3_ref.dtype), w3_ref[...],
                preferred_element_type=jnp.float32)
    dec_ref[...] = (d + b3_ref[...]).astype(dec_ref.dtype)


def _pick_tm(batch):
    """Batch tile: >=8 rows, >=2 tiles for mid/large batches (v7x 2 TCs), cap 512."""
    if batch <= 8:
        return 8
    half = (batch + 1) // 2
    tm = ((half + 7) // 8) * 8
    return min(512, tm)


def autoencoder_linear_kwta(x_nchw, params, *, tm=None, out_dtype=jnp.bfloat16):
    """Run the autoencoder forward pass.

    x_nchw: (B, C, H, W) float32
    params: dict with w1 (D0,D1), b1 (1,D1), w2 (D1,E), w3 (E,D0), b3 (1,D0);
            weights expected in bf16 (see prepare_params), biases in f32.
    returns (encoded (B,E), decoded (B,C,H,W)), both in `out_dtype`.
    """
    input_shape = x_nchw.shape
    B = input_shape[0]
    x = x_nchw.reshape(B, -1)                      # Flatten()
    D0 = x.shape[1]

    w1, b1, w2, w3, b3 = (params["w1"], params["b1"], params["w2"],
                          params["w3"], params["b3"])
    D1 = w1.shape[1]
    E = w2.shape[1]

    if tm is None:
        tm = _pick_tm(B)
    n_tiles = pl.cdiv(B, tm)

    out_bytes = jnp.dtype(out_dtype).itemsize
    w_bytes = jnp.dtype(w1.dtype).itemsize
    flops = 2 * B * (D0 * D1 + D1 * E + E * D0)
    bytes_accessed = (
        B * D0 * 4                                    # x (f32, read once)
        + (D0 * D1 + D1 * E + E * D0) * w_bytes       # weights (resident, read once)
        + (D1 + D0) * 4                               # biases (f32)
        + B * E * out_bytes + B * D0 * out_bytes      # enc + dec writebacks
    )

    batch2d = lambda i: (i, 0)
    const2d = lambda i: (0, 0)

    enc, dec = pl.pallas_call(
        _ae_kernel,
        grid=(n_tiles,),
        in_specs=[
            pl.BlockSpec((tm, D0), batch2d),   # x tile, pipelined over batch
            pl.BlockSpec((D0, D1), const2d),   # w1 (VMEM-resident after step 0)
            pl.BlockSpec((1, D1), const2d),    # b1
            pl.BlockSpec((D1, E), const2d),    # w2
            pl.BlockSpec((E, D0), const2d),    # w3
            pl.BlockSpec((1, D0), const2d),    # b3
        ],
        out_specs=[
            pl.BlockSpec((tm, E), batch2d),    # enc written at true 64-lane width
            pl.BlockSpec((tm, D0), batch2d),
        ],
        out_shape=(
            jax.ShapeDtypeStruct((B, E), out_dtype),
            jax.ShapeDtypeStruct((B, D0), out_dtype),
        ),
        compiler_params=pltpu.CompilerParams(
            dimension_semantics=("parallel",),
        ),
        cost_estimate=pl.CostEstimate(
            flops=flops, transcendentals=0, bytes_accessed=bytes_accessed),
    )(x, w1, b1, w2, w3, b3)

    encoded = enc
    decoded = dec.reshape(input_shape)
    return encoded, decoded


def init_params(key, input_dim, encoding_dim):
    """Deterministic init mimicking nn.Linear default (uniform +-1/sqrt(fan_in))."""
    d0, d1 = input_dim
    k1, k2, k3, k4, k5 = jax.random.split(key, 5)

    def u(k, shape, fan_in):
        bound = 1.0 / jnp.sqrt(float(fan_in))
        return jax.random.uniform(k, shape, jnp.float32, -bound, bound)

    return {
        # stored as (in_features, out_features) for x @ W
        "w1": u(k1, (d0, d1), d0),
        "b1": u(k2, (1, d1), d0),
        "w2": u(k3, (d1, encoding_dim), d1),     # bias=False
        "w3": u(k4, (encoding_dim, d0), encoding_dim),
        "b3": u(k5, (1, d0), encoding_dim),
    }


def prepare_params(params):
    """One-time cast of weights to bf16 (MXU-native); biases stay f32."""
    return {
        "w1": params["w1"].astype(jnp.bfloat16),
        "b1": params["b1"].astype(jnp.float32),
        "w2": params["w2"].astype(jnp.bfloat16),
        "w3": params["w3"].astype(jnp.bfloat16),
        "b3": params["b3"].astype(jnp.float32),
    }


if __name__ == "__main__":
    # Small shapes consistent with the module: NCHW image flattened to 256,
    # input_dim=[256, 128], encoding_dim=64.
    B, C, H, W = 2, 4, 8, 8
    input_dim = [C * H * W, 128]     # [256, 128]
    encoding_dim = 64

    key = jax.random.PRNGKey(0)
    kx, kp = jax.random.split(key)
    x = jax.random.normal(kx, (B, C, H, W), jnp.float32)
    params_f32 = init_params(kp, input_dim, encoding_dim)
    params = prepare_params(params_f32)          # hoisted one-time weight cast

    encoded, decoded = autoencoder_linear_kwta(x, params)
    jax.block_until_ready((encoded, decoded))

    # Reference mirroring the kernel's bf16-operand / f32-accumulate arithmetic.
    q = lambda a: a.astype(jnp.bfloat16).astype(jnp.float32)
    xf = q(x.reshape(B, -1))
    w1f, w2f, w3f = q(params_f32["w1"]), q(params_f32["w2"]), q(params_f32["w3"])
    h_ref = jnp.maximum(xf @ w1f + params_f32["b1"], 0.0)
    e_ref = jnp.maximum(q(h_ref) @ w2f, 0.0)
    d_ref = (q(e_ref) @ w3f + params_f32["b3"]).reshape(B, C, H, W)

    assert encoded.shape == (B, encoding_dim)
    assert decoded.shape == (B, C, H, W)
    assert jnp.allclose(encoded.astype(jnp.float32), e_ref, atol=5e-2, rtol=5e-2)
    assert jnp.allclose(decoded.astype(jnp.float32), d_ref, atol=5e-2, rtol=5e-2)

    print("KERNEL_OK")
</pallas_src>

<mosaic_0001>
module attributes {stable_mosaic.version = 11 : i64} {
  func.func @_ae_kernel(%arg0: i32, %arg1: memref<8x256xf32, #tpu.memory_space<vmem>>, %arg2: memref<256x128xbf16, #tpu.memory_space<vmem>>, %arg3: memref<1x128xf32, #tpu.memory_space<vmem>>, %arg4: memref<128x64xbf16, #tpu.memory_space<vmem>>, %arg5: memref<64x256xbf16, #tpu.memory_space<vmem>>, %arg6: memref<1x256xf32, #tpu.memory_space<vmem>>, %arg7: memref<8x64xbf16, #tpu.memory_space<vmem>>, %arg8: memref<8x256xbf16, #tpu.memory_space<vmem>>) attributes {dimension_semantics = [#tpu.dimension_semantics<parallel>], iteration_bounds = array<i64: 1>, scalar_prefetch = 0 : i64, scratch_operands = 0 : i64, tpu.core_type = #tpu.core_type<tc>, window_params = [{transform_indices = @transform_0, window_bounds = array<i64: 8, 256>}, {pipeline_mode = #tpu.pipeline_mode<synchronous>, transform_indices = @transform_1, window_bounds = array<i64: 256, 128>}, {pipeline_mode = #tpu.pipeline_mode<synchronous>, transform_indices = @transform_2, window_bounds = array<i64: 1, 128>}, {pipeline_mode = #tpu.pipeline_mode<synchronous>, transform_indices = @transform_3, window_bounds = array<i64: 128, 64>}, {pipeline_mode = #tpu.pipeline_mode<synchronous>, transform_indices = @transform_4, window_bounds = array<i64: 64, 256>}, {pipeline_mode = #tpu.pipeline_mode<synchronous>, transform_indices = @transform_5, window_bounds = array<i64: 1, 256>}, {transform_indices = @transform_6, window_bounds = array<i64: 8, 64>}, {transform_indices = @transform_7, window_bounds = array<i64: 8, 256>}]} {
    %c0 = arith.constant 0 : index
    %c0_0 = arith.constant 0 : index
    %0 = vector.load %arg1[%c0, %c0_0] : memref<8x256xf32, #tpu.memory_space<vmem>>, vector<8x256xf32>
    %1 = arith.truncf %0 : vector<8x256xf32> to vector<8x256xbf16>
    %c0_1 = arith.constant 0 : index
    %c0_2 = arith.constant 0 : index
    %2 = vector.load %arg2[%c0_1, %c0_2] : memref<256x128xbf16, #tpu.memory_space<vmem>>, vector<256x128xbf16>
    %cst = arith.constant dense<0.000000e+00> : vector<8x128xf32>
    %3 = tpu.matmul %1, %2, %cst {dimension_numbers = #tpu.dot_dimension_numbers<[1], [0], [0], [1], [0, 0, 1, 1], [], []>} : vector<8x256xbf16>, vector<256x128xbf16>, vector<8x128xf32> -> vector<8x128xf32>
    %c0_3 = arith.constant 0 : index
    %c0_4 = arith.constant 0 : index
    %4 = vector.load %arg3[%c0_3, %c0_4] : memref<1x128xf32, #tpu.memory_space<vmem>>, vector<1x128xf32>
    %5 = vector.broadcast %4 : vector<1x128xf32> to vector<8x128xf32>
    %6 = arith.addf %3, %5 : vector<8x128xf32>
    %cst_5 = arith.constant 0.000000e+00 : f32
    %7 = vector.broadcast %cst_5 : f32 to vector<8x128xf32>
    %8 = arith.maximumf %6, %7 : vector<8x128xf32>
    %9 = arith.truncf %8 : vector<8x128xf32> to vector<8x128xbf16>
    %c0_6 = arith.constant 0 : index
    %c0_7 = arith.constant 0 : index
    %10 = vector.load %arg4[%c0_6, %c0_7] : memref<128x64xbf16, #tpu.memory_space<vmem>>, vector<128x64xbf16>
    %cst_8 = arith.constant dense<0.000000e+00> : vector<8x64xf32>
    %11 = tpu.matmul %9, %10, %cst_8 {dimension_numbers = #tpu.dot_dimension_numbers<[1], [0], [0], [1], [0, 0, 1, 1], [], []>} : vector<8x128xbf16>, vector<128x64xbf16>, vector<8x64xf32> -> vector<8x64xf32>
    %cst_9 = arith.constant 0.000000e+00 : f32
    %12 = vector.broadcast %cst_9 : f32 to vector<8x64xf32>
    %13 = arith.maximumf %11, %12 : vector<8x64xf32>
    %14 = arith.truncf %13 : vector<8x64xf32> to vector<8x64xbf16>
    %c0_10 = arith.constant 0 : index
    %c0_11 = arith.constant 0 : index
    %15 = vector.load %arg7[%c0_10, %c0_11] : memref<8x64xbf16, #tpu.memory_space<vmem>>, vector<8x64xbf16>
    tpu.vector_store %arg7[%c0_10, %c0_11], %14 {strides = array<i32>} : memref<8x64xbf16, #tpu.memory_space<vmem>>, vector<8x64xbf16>,
    %16 = arith.truncf %13 : vector<8x64xf32> to vector<8x64xbf16>
    %c0_12 = arith.constant 0 : index
    %c0_13 = arith.constant 0 : index
    %17 = vector.load %arg5[%c0_12, %c0_13] : memref<64x256xbf16, #tpu.memory_space<vmem>>, vector<64x256xbf16>
    %cst_14 = arith.constant dense<0.000000e+00> : vector<8x256xf32>
    %18 = tpu.matmul %16, %17, %cst_14 {dimension_numbers = #tpu.dot_dimension_numbers<[1], [0], [0], [1], [0, 0, 1, 1], [], []>} : vector<8x64xbf16>, vector<64x256xbf16>, vector<8x256xf32> -> vector<8x256xf32>
    %c0_15 = arith.constant 0 : index
    %c0_16 = arith.constant 0 : index
    %19 = vector.load %arg6[%c0_15, %c0_16] : memref<1x256xf32, #tpu.memory_space<vmem>>, vector<1x256xf32>
    %20 = vector.broadcast %19 : vector<1x256xf32> to vector<8x256xf32>
    %21 = arith.addf %18, %20 : vector<8x256xf32>
    %22 = arith.truncf %21 : vector<8x256xf32> to vector<8x256xbf16>
    %c0_17 = arith.constant 0 : index
    %c0_18 = arith.constant 0 : index
    %23 = vector.load %arg8[%c0_17, %c0_18] : memref<8x256xbf16, #tpu.memory_space<vmem>>, vector<8x256xbf16>
    tpu.vector_store %arg8[%c0_17, %c0_18], %22 {strides = array<i32>} : memref<8x256xbf16, #tpu.memory_space<vmem>>, vector<8x256xbf16>,
    return
  }
  func.func @transform_0(%arg0: i32) -> (i32, i32) {
    %c0_i32 = arith.constant 0 : i32
    %c0_i32_0 = arith.constant 0 : i32
    return %arg0, %c0_i32 : i32, i32
  }
  func.func @transform_1(%arg0: i32) -> (i32, i32) {
    %c0_i32 = arith.constant 0 : i32
    %c0_i32_0 = arith.constant 0 : i32
    %c0_i32_1 = arith.constant 0 : i32
    return %c0_i32, %c0_i32_0 : i32, i32
  }
  func.func @transform_2(%arg0: i32) -> (i32, i32) {
    %c0_i32 = arith.constant 0 : i32
    %c0_i32_0 = arith.constant 0 : i32
    %c0_i32_1 = arith.constant 0 : i32
    return %c0_i32, %c0_i32_0 : i32, i32
  }
  func.func @transform_3(%arg0: i32) -> (i32, i32) {
    %c0_i32 = arith.constant 0 : i32
    %c0_i32_0 = arith.constant 0 : i32
    %c0_i32_1 = arith.constant 0 : i32
    return %c0_i32, %c0_i32_0 : i32, i32
  }
  func.func @transform_4(%arg0: i32) -> (i32, i32) {
    %c0_i32 = arith.constant 0 : i32
    %c0_i32_0 = arith.constant 0 : i32
    %c0_i32_1 = arith.constant 0 : i32
    return %c0_i32, %c0_i32_0 : i32, i32
  }
  func.func @transform_5(%arg0: i32) -> (i32, i32) {
    %c0_i32 = arith.constant 0 : i32
    %c0_i32_0 = arith.constant 0 : i32
    %c0_i32_1 = arith.constant 0 : i32
    return %c0_i32, %c0_i32_0 : i32, i32
  }
  func.func @transform_6(%arg0: i32) -> (i32, i32) {
    %c0_i32 = arith.constant 0 : i32
    %c0_i32_0 = arith.constant 0 : i32
    return %arg0, %c0_i32 : i32, i32
  }
  func.func @transform_7(%arg0: i32) -> (i32, i32) {
    %c0_i32 = arith.constant 0 : i32
    %c0_i32_0 = arith.constant 0 : i32
    return %arg0, %c0_i32 : i32, i32
  }
}

</mosaic_0001>

<llo_original>
// kernel: tpu_custom_call.1
$region0: #{tpu_custom_call.1}
  #allocation0 [shape = 'u32[]', space=smem, size = 0x4, offset = 0x4, fixed_abs, tag = 'smem constant byte address 0x4 - core index']
  #allocation1 [shape = 'u32[144,128]{1,0:T(1,128)}', space=vmem, size = 0x12000, scoped, tag = 'internal scratch']
  %s0 = inlined_call_operand.vmem [shape: f32[2,256], index: 0, kind: input, shape index: {}]
  %s1 = inlined_call_operand.hbm [shape: bf16[256,128], index: 1, kind: input, shape index: {}]
  %s2 = inlined_call_operand.vmem [shape: f32[1,128], index: 2, kind: input, shape index: {}]
  %s3 = inlined_call_operand.vmem [shape: bf16[128,64], index: 3, kind: input, shape index: {}]
  %s4 = inlined_call_operand.vmem [shape: bf16[64,256], index: 4, kind: input, shape index: {}]
  %s5 = inlined_call_operand.vmem [shape: f32[1,256], index: 5, kind: input, shape index: {}]
  %s6 = inlined_call_operand.hbm [shape: bf16[2,64], index: 6, kind: output, shape index: {0}]
  %s7 = inlined_call_operand.hbm [shape: bf16[2,256], index: 7, kind: output, shape index: {1}]
  %8 = xla_tuple %s6, %s7
  %s9 = sld [smem:[#allocation0]]
  $region46: #{tpu_custom_call.1} parent=0
    _
  %s11 = ssub.s32 1, %s9
  %s12 = scalar_select 0, %s11, %s9
  $region1: #{tpu_custom_call.1} parent=0
    #allocation2 [shape = 'u8[65536]{0}', space=vmem, size = 0x10000, scoped, tag = 'input window, operand 1, single buffered']
    #allocation3 [shape = 's32[1]{0}', space=sflag, size = 0x4, scoped, tag = 'scoped memory for tpu_custom_call.1']
    #allocation4 [shape = 's32[1]{0}', space=sflag, size = 0x4, scoped, tag = 'scoped memory for tpu_custom_call.1']
    #allocation5 [shape = 'u8[2048]{0}', space=vmem, size = 0x800, scoped, tag = 'output window, operand 0, single buffered']
    #allocation6 [shape = 'u8[4096]{0}', space=vmem, size = 0x1000, scoped, tag = 'output window, operand 1, single buffered']
    #allocation7 [shape = 's32[1]{0}', space=sflag, size = 0x4, scoped, tag = 'scoped memory for tpu_custom_call.1']
    %13 = vsyncpa [#allocation3], 0
    %14 = vsyncpa [#allocation4], 0
    %15 = vsyncpa [#allocation7], 0
    // Predicated region
    $region2: #{tpu_custom_call.1} parent=1 // pred_check
      _
    $region3: #{tpu_custom_call.1} parent=1 // pred_check_branch
      %17 = sbr.rel (0) target = $region5
    $region4: #{tpu_custom_call.1} parent=1 // pred_region
      _
    $region5: #{tpu_custom_call.1} parent=1 // pred_fallthru
      _
    // Predicated region
    $region6: #{tpu_custom_call.1} parent=1 // pred_check
      _
    $region7: #{tpu_custom_call.1} parent=1 // pred_check_branch
      %19 = sbr.rel (0) target = $region9
    $region8: #{tpu_custom_call.1} parent=1 // pred_region
      %s21 = ssub.s32 2048, 2048
      %22 = vsyncadd [#allocation3], %s21
      %s23 = sshll.u32 [#allocation2], 4
      %s24 = int_to_ptr.vmem [resolvable:$true] %s23
      %29 = dma.hbm_to_vmem [thread:$0]  %s1, 2048, %s24, [#allocation3], 64, 64, 4
    $region9: #{tpu_custom_call.1} parent=1 // pred_fallthru
      _
    // Predicated region
    $region10: #{tpu_custom_call.1} parent=1 // pred_check
      _
    $region11: #{tpu_custom_call.1} parent=1 // pred_check_branch
      %31 = sbr.rel (0) target = $region13
    $region12: #{tpu_custom_call.1} parent=1 // pred_region
      _
    $region13: #{tpu_custom_call.1} parent=1 // pred_fallthru
      _
    // Predicated region
    $region14: #{tpu_custom_call.1} parent=1 // pred_check
      _
    $region15: #{tpu_custom_call.1} parent=1 // pred_check_branch
      %33 = sbr.rel (0) target = $region17
    $region16: #{tpu_custom_call.1} parent=1 // pred_region
      _
    $region17: #{tpu_custom_call.1} parent=1 // pred_fallthru
      _
    // Predicated region
    $region18: #{tpu_custom_call.1} parent=1 // pred_check
      _
    $region19: #{tpu_custom_call.1} parent=1 // pred_check_branch
      %35 = sbr.rel (0) target = $region21
    $region20: #{tpu_custom_call.1} parent=1 // pred_region
      _
    $region21: #{tpu_custom_call.1} parent=1 // pred_fallthru
      _
    // Predicated region
    $region22: #{tpu_custom_call.1} parent=1 // pred_check
      _
    $region23: #{tpu_custom_call.1} parent=1 // pred_check_branch
      %37 = sbr.rel (0) target = $region25
    $region24: #{tpu_custom_call.1} parent=1 // pred_region
      _
    $region25: #{tpu_custom_call.1} parent=1 // pred_fallthru
      _
    // Predicated region
    $region26: #{tpu_custom_call.1} parent=1 // pred_check
      _
    $region27: #{tpu_custom_call.1} parent=1 // pred_check_branch
      %39 = sbr.rel (0) target = $region29
    $region28: #{tpu_custom_call.1} parent=1 // pred_region
      %40 = dma.done [#allocation3], 2048
    $region29: #{tpu_custom_call.1} parent=1 // pred_fallthru
      _
    %v42 = vld [vmem:[%s0] sm:$0xf]
    %v43 = vld [vmem:[%s0 + $0x4] sm:$0xf]
    %v44 = vld [vmem:[%s0 + $0x8] sm:$0xf]
    %v45 = vld [vmem:[%s0 + $0xc] sm:$0xf]
    %v50 = vcombine.low %v42, %v43
    %v51 = vcombine.low %v44, %v45
    %v53 = vunpack.c.l.s4 1983009808
    %v54 = vunpack.c.0.s8 %v53
    %v55 = vlaneseq
    %v56 = vshrl.u32 %v55, 7
    %v57 = vsub.s32 %v54, %v56
    %v58 = vrot.slane %v50, %v57
    %v60 = vunpack.c.l.s4 1983009808
    %v61 = vunpack.c.0.s8 %v60
    %v62 = vlaneseq
    %v63 = vshrl.u32 %v62, 7
    %v64 = vsub.s32 %v61, %v63
    %v65 = vrot.slane %v51, %v64
    %v66 = vcombine.low %v58, %v65
    %v67 = vcombine.high %v58, %v65
    %v70 = vpack.c.bf16 %v66, %v66
    %v71 = vpack.c.bf16 %v67, %v67
    %v72 = vld [vmem:[#allocation2] sm:$0xf]
    %v73 = vld [vmem:[#allocation2 + $0x4] sm:$0xf]
    %v74 = vld [vmem:[#allocation2 + $0x8] sm:$0xf]
    %v75 = vld [vmem:[#allocation2 + $0xc] sm:$0xf]
    %v76 = vld [vmem:[#allocation2 + $0x10] sm:$0xf]
    %v77 = vld [vmem:[#allocation2 + $0x14] sm:$0xf]
    %v78 = vld [vmem:[#allocation2 + $0x18] sm:$0xf]
    %v79 = vld [vmem:[#allocation2 + $0x1c] sm:$0xf]
    %v80 = vld [vmem:[#allocation2 + $0x20] sm:$0xf]
    %v81 = vld [vmem:[#allocation2 + $0x24] sm:$0xf]
    %v82 = vld [vmem:[#allocation2 + $0x28] sm:$0xf]
    %v83 = vld [vmem:[#allocation2 + $0x2c] sm:$0xf]
    %v84 = vld [vmem:[#allocation2 + $0x30] sm:$0xf]
    %v85 = vld [vmem:[#allocation2 + $0x34] sm:$0xf]
    %v86 = vld [vmem:[#allocation2 + $0x38] sm:$0xf]
    %v87 = vld [vmem:[#allocation2 + $0x3c] sm:$0xf]
    %v88 = vld [vmem:[#allocation2 + $0x40] sm:$0xf]
    %v89 = vld [vmem:[#allocation2 + $0x44] sm:$0xf]
    %v90 = vld [vmem:[#allocation2 + $0x48] sm:$0xf]
    %v91 = vld [vmem:[#allocation2 + $0x4c] sm:$0xf]
    %v92 = vld [vmem:[#allocation2 + $0x50] sm:$0xf]
    %v93 = vld [vmem:[#allocation2 + $0x54] sm:$0xf]
    %v94 = vld [vmem:[#allocation2 + $0x58] sm:$0xf]
    %v95 = vld [vmem:[#allocation2 + $0x5c] sm:$0xf]
    %v96 = vld [vmem:[#allocation2 + $0x60] sm:$0xf]
    %v97 = vld [vmem:[#allocation2 + $0x64] sm:$0xf]
    %v98 = vld [vmem:[#allocation2 + $0x68] sm:$0xf]
    %v99 = vld [vmem:[#allocation2 + $0x6c] sm:$0xf]
    %v100 = vld [vmem:[#allocation2 + $0x70] sm:$0xf]
    %v101 = vld [vmem:[#allocation2 + $0x74] sm:$0xf]
    %v102 = vld [vmem:[#allocation2 + $0x78] sm:$0xf]
    %v103 = vld [vmem:[#allocation2 + $0x7c] sm:$0xf]
    %v104 = vld [vmem:[%s2] sm:$0x1]
    %v106 = vlaneseq
    %v107 = vshrl.u32 %v106, 7
    %v108 = vsub.s32 0, %v107
    %v109 = vrot.slane %v104, %v108
    %v143 = vunpack.c.l.b16 %v72
    %v144 = vunpack.c.l.b16 %v73
    %v145 = vunpack.c.l.b16 %v74
    %v146 = vunpack.c.l.b16 %v75
    %v147 = vunpack.c.l.b16 %v76
    %v148 = vunpack.c.l.b16 %v77
    %v149 = vunpack.c.l.b16 %v78
    %v150 = vunpack.c.l.b16 %v79
    %v151 = vunpack.c.l.b16 %v80
    %v152 = vunpack.c.l.b16 %v81
    %v153 = vunpack.c.l.b16 %v82
    %v154 = vunpack.c.l.b16 %v83
    %v155 = vunpack.c.l.b16 %v84
    %v156 = vunpack.c.l.b16 %v85
    %v157 = vunpack.c.l.b16 %v86
    %v158 = vunpack.c.l.b16 %v87
    %v159 = vunpack.c.l.b16 %v88
    %v160 = vunpack.c.l.b16 %v89
    %v161 = vunpack.c.l.b16 %v90
    %v162 = vunpack.c.l.b16 %v91
    %v163 = vunpack.c.l.b16 %v92
    %v164 = vunpack.c.l.b16 %v93
    %v165 = vunpack.c.l.b16 %v94
    %v166 = vunpack.c.l.b16 %v95
    %v167 = vunpack.c.l.b16 %v96
    %v168 = vunpack.c.l.b16 %v97
    %v169 = vunpack.c.l.b16 %v98
    %v170 = vunpack.c.l.b16 %v99
    %v171 = vunpack.c.l.b16 %v100
    %v172 = vunpack.c.l.b16 %v101
    %v173 = vunpack.c.l.b16 %v102
    %v174 = vunpack.c.l.b16 %v103
    %v175 = vpack.c.b16 %v144, %v143
    %v176 = vpack.c.b16 %v146, %v145
    %v177 = vpack.c.b16 %v148, %v147
    %v178 = vpack.c.b16 %v150, %v149
    %v179 = vpack.c.b16 %v152, %v151
    %v180 = vpack.c.b16 %v154, %v153
    %v181 = vpack.c.b16 %v156, %v155
    %v182 = vpack.c.b16 %v158, %v157
    %v183 = vpack.c.b16 %v160, %v159
    %v184 = vpack.c.b16 %v162, %v161
    %v185 = vpack.c.b16 %v164, %v163
    %v186 = vpack.c.b16 %v166, %v165
    %v187 = vpack.c.b16 %v168, %v167
    %v188 = vpack.c.b16 %v170, %v169
    %v189 = vpack.c.b16 %v172, %v171
    %v190 = vpack.c.b16 %v174, %v173
    %207 = vmatprep.subr.bf16.mxu0 0
    %208 = vmatpush1.bf16.msra.mxu0 %v175
    %209 = vmatprep.subr.bf16.mxu0 0
    %210 = vmatpush1.bf16.msra.mxu0 %v176
    %211 = vmatprep.subr.bf16.mxu0 0
    %212 = vmatpush1.bf16.msra.mxu0 %v177
    %213 = vmatprep.subr.bf16.mxu0 0
    %214 = vmatpush1.bf16.msra.mxu0 %v178
    %215 = vmatprep.subr.bf16.mxu0 0
    %216 = vmatpush1.bf16.msra.mxu0 %v179
    %217 = vmatprep.subr.bf16.mxu0 0
    %218 = vmatpush1.bf16.msra.mxu0 %v180
    %219 = vmatprep.subr.bf16.mxu0 0
    %220 = vmatpush1.bf16.msra.mxu0 %v181
    %221 = vmatprep.subr.bf16.mxu0 0
    %222 = vmatpush1.bf16.msra.mxu0 %v182
    %223 = vmatprep.subr.bf16.mxu0 0
    %224 = vmatpush1.bf16.msra.mxu0 %v183
    %225 = vmatprep.subr.bf16.mxu0 0
    %226 = vmatpush1.bf16.msra.mxu0 %v184
    %227 = vmatprep.subr.bf16.mxu0 0
    %228 = vmatpush1.bf16.msra.mxu0 %v185
    %229 = vmatprep.subr.bf16.mxu0 0
    %230 = vmatpush1.bf16.msra.mxu0 %v186
    %231 = vmatprep.subr.bf16.mxu0 0
    %232 = vmatpush1.bf16.msra.mxu0 %v187
    %233 = vmatprep.subr.bf16.mxu0 0
    %234 = vmatpush1.bf16.msra.mxu0 %v188
    %235 = vmatprep.subr.bf16.mxu0 0
    %236 = vmatpush1.bf16.msra.mxu0 %v189
    %237 = vmatprep.subr.bf16.mxu0 0
    %238 = vmatpush1.bf16.msra.mxu0 %v190
    %239 = vmatprep.mubr.bf16.mxu0 %v71
    %240 = vmatmul.mubr.bf16.gmra.mrb[0].mxu0 %v70
    %v241 = vpop.f32.mrb[0].mxu0
    %v242 = vadd.f32 %v109, %v241
    %v243 = vpop.f32.mrb[0].mxu0
    %v244 = vpop.f32.mrb[0].mxu0
    %v245 = vpop.f32.mrb[0].mxu0
    %246 = vdwg.mxu0
    %v247 = vmax.f32 %v242, 0.0
    %v248 = vpack.c.bf16 %v247, %v247
    %v249 = vld [vmem:[%s3] sm:$0xf]
    %v250 = vld [vmem:[%s3 + $0x4] sm:$0xf]
    %v251 = vld [vmem:[%s3 + $0x8] sm:$0xf]
    %v252 = vld [vmem:[%s3 + $0xc] sm:$0xf]
    %v253 = vld [vmem:[%s3 + $0x10] sm:$0xf]
    %v254 = vld [vmem:[%s3 + $0x14] sm:$0xf]
    %v255 = vld [vmem:[%s3 + $0x18] sm:$0xf]
    %v256 = vld [vmem:[%s3 + $0x1c] sm:$0xf]
    %v257 = vld [vmem:[%s3 + $0x20] sm:$0xf]
    %v258 = vld [vmem:[%s3 + $0x24] sm:$0xf]
    %v259 = vld [vmem:[%s3 + $0x28] sm:$0xf]
    %v260 = vld [vmem:[%s3 + $0x2c] sm:$0xf]
    %v261 = vld [vmem:[%s3 + $0x30] sm:$0xf]
    %v262 = vld [vmem:[%s3 + $0x34] sm:$0xf]
    %v263 = vld [vmem:[%s3 + $0x38] sm:$0xf]
    %v264 = vld [vmem:[%s3 + $0x3c] sm:$0xf]
    %v281 = vunpack.c.l.b16 %v249
    %v282 = vunpack.c.l.b16 %v250
    %v283 = vunpack.c.l.b16 %v251
    %v284 = vunpack.c.l.b16 %v252
    %v285 = vunpack.c.l.b16 %v253
    %v286 = vunpack.c.l.b16 %v254
    %v287 = vunpack.c.l.b16 %v255
    %v288 = vunpack.c.l.b16 %v256
    %v289 = vunpack.c.l.b16 %v257
    %v290 = vunpack.c.l.b16 %v258
    %v291 = vunpack.c.l.b16 %v259
    %v292 = vunpack.c.l.b16 %v260
    %v293 = vunpack.c.l.b16 %v261
    %v294 = vunpack.c.l.b16 %v262
    %v295 = vunpack.c.l.b16 %v263
    %v296 = vunpack.c.l.b16 %v264
    %v297 = vpack.c.b16 %v282, %v281
    %v298 = vpack.c.b16 %v284, %v283
    %v299 = vpack.c.b16 %v286, %v285
    %v300 = vpack.c.b16 %v288, %v287
    %v301 = vpack.c.b16 %v290, %v289
    %v302 = vpack.c.b16 %v292, %v291
    %v303 = vpack.c.b16 %v294, %v293
    %v304 = vpack.c.b16 %v296, %v295
    %313 = vmatprep.subr.bf16.mxu0 0
    %314 = vmatpush1.bf16.msra.mxu0 %v297
    %315 = vmatprep.subr.bf16.mxu0 0
    %316 = vmatpush1.bf16.msra.mxu0 %v298
    %317 = vmatprep.subr.bf16.mxu0 0
    %318 = vmatpush1.bf16.msra.mxu0 %v299
    %319 = vmatprep.subr.bf16.mxu0 0
    %320 = vmatpush1.bf16.msra.mxu0 %v300
    %321 = vmatprep.subr.bf16.mxu0 0
    %322 = vmatpush1.bf16.msra.mxu0 %v301
    %323 = vmatprep.subr.bf16.mxu0 0
    %324 = vmatpush1.bf16.msra.mxu0 %v302
    %325 = vmatprep.subr.bf16.mxu0 0
    %326 = vmatpush1.bf16.msra.mxu0 %v303
    %327 = vmatprep.subr.bf16.mxu0 0
    %328 = vmatpush1.bf16.msra.mxu0 %v304
    %329 = vmatprep.subr.bf16.mxu0 0
    %330 = vmatpush1.bf16.msra.mxu0 0
    %331 = vmatprep.subr.bf16.mxu0 0
    %332 = vmatpush1.bf16.msra.mxu0 0
    %333 = vmatprep.subr.bf16.mxu0 0
    %334 = vmatpush1.bf16.msra.mxu0 0
    %335 = vmatprep.subr.bf16.mxu0 0
    %336 = vmatpush1.bf16.msra.mxu0 0
    %337 = vmatprep.subr.bf16.mxu0 0
    %338 = vmatpush1.bf16.msra.mxu0 0
    %339 = vmatprep.subr.bf16.mxu0 0
    %340 = vmatpush1.bf16.msra.mxu0 0
    %341 = vmatprep.subr.bf16.mxu0 0
    %342 = vmatpush1.bf16.msra.mxu0 0
    %343 = vmatprep.subr.bf16.mxu0 0
    %344 = vmatpush1.bf16.msra.mxu0 0
    %345 = vmatprep.mubr.bf16.mxu0 0
    %346 = vmatmul.mubr.bf16.gmra.mrb[0].mxu0 %v248
    %v347 = vpop.f32.mrb[0].mxu0
    %v348 = vadd.f32 0.0, %v347
    %v349 = vpop.f32.mrb[0].mxu0
    %v350 = vpop.f32.mrb[0].mxu0
    %v351 = vpop.f32.mrb[0].mxu0
    %352 = vdwg.mxu0
    %v353 = vmax.f32 %v348, 0.0
    %v354 = vpack.c.bf16 %v353, %v353
    %v357 = vunpack.c.l.s4 1966171168
    %v358 = vunpack.c.0.s8 %v357
    %v359 = vlaneseq
    %v360 = vshrl.u32 %v359, 7
    %v361 = vsub.s32 %v358, %v360
    %v362 = vrot.slane %v354, %v361
    %v363 = vcombine.high %v362, %v362
    %v365 = vunpack.c.l.s4 1966171168
    %v366 = vunpack.c.0.s8 %v365
    %v367 = vlaneseq
    %v368 = vshrl.u32 %v367, 7
    %v369 = vsub.s32 %v366, %v368
    %v370 = vrot.slane %v362, %v369
    %v372 = vunpack.c.l.s4 1966171168
    %v373 = vunpack.c.0.s8 %v372
    %v374 = vlaneseq
    %v375 = vshrl.u32 %v374, 7
    %v376 = vsub.s32 %v373, %v375
    %v377 = vrot.slane %v363, %v376
    %v378 = vcombine.high %v370, %v370
    %v379 = vcombine.high %v377, %v377
    %vm384 = vcmask 516096
    %385 = vst.msk [vmem:[#allocation5] sm:$0x1] %vm384, %v370
    %386 = vst.msk [vmem:[#allocation5 + $0x1] sm:$0x1] %vm384, %v377
    %387 = vst.msk [vmem:[#allocation5 + $0x2] sm:$0x1] %vm384, %v378
    %388 = vst.msk [vmem:[#allocation5 + $0x3] sm:$0x1] %vm384, %v379
    %v389 = vld [vmem:[%s4] sm:$0xff]
    %v390 = vld [vmem:[%s4 + $0x8] sm:$0xff]
    %v391 = vld [vmem:[%s4 + $0x10] sm:$0xff]
    %v392 = vld [vmem:[%s4 + $0x18] sm:$0xff]
    %v393 = vld [vmem:[%s4 + $0x20] sm:$0xff]
    %v394 = vld [vmem:[%s4 + $0x28] sm:$0xff]
    %v395 = vld [vmem:[%s4 + $0x30] sm:$0xff]
    %v396 = vld [vmem:[%s4 + $0x38] sm:$0xff]
    %v397 = vld [vmem:[%s5] sm:$0x3]
    %v399 = vlaneseq
    %v400 = vshrl.u32 %v399, 7
    %v401 = vsub.s32 0, %v400
    %v402 = vrot.slane %v397, %v401
    %v403 = vlaneseq
    %v404 = vshrl.u32 %v403, 7
    %v405 = vsub.s32 1, %v404
    %v406 = vrot.slane %v397, %v405
    %v417 = vunpack.c.l.b16 %v389
    %v418 = vunpack.c.h.b16 %v389
    %v419 = vunpack.c.l.b16 %v390
    %v420 = vunpack.c.h.b16 %v390
    %v421 = vunpack.c.l.b16 %v391
    %v422 = vunpack.c.h.b16 %v391
    %v423 = vunpack.c.l.b16 %v392
    %v424 = vunpack.c.h.b16 %v392
    %v425 = vunpack.c.l.b16 %v393
    %v426 = vunpack.c.h.b16 %v393
    %v427 = vunpack.c.l.b16 %v394
    %v428 = vunpack.c.h.b16 %v394
    %v429 = vunpack.c.l.b16 %v395
    %v430 = vunpack.c.h.b16 %v395
    %v431 = vunpack.c.l.b16 %v396
    %v432 = vunpack.c.h.b16 %v396
    %v433 = vpack.c.b16 %v419, %v417
    %v434 = vpack.c.b16 %v420, %v418
    %v435 = vpack.c.b16 %v423, %v421
    %v436 = vpack.c.b16 %v424, %v422
    %v437 = vpack.c.b16 %v427, %v425
    %v438 = vpack.c.b16 %v428, %v426
    %v439 = vpack.c.b16 %v431, %v429
    %v440 = vpack.c.b16 %v432, %v430
    %vm449 = vcmask 523264
    %v451 = vsel %vm449, %v354, 0
    %453 = vmatprep.subr.bf16.mxu0 %v434
    %454 = vmatpush1.bf16.msra.mxu0 %v433
    %455 = vmatprep.subr.bf16.mxu0 %v436
    %456 = vmatpush1.bf16.msra.mxu0 %v435
    %457 = vmatprep.subr.bf16.mxu0 %v438
    %458 = vmatpush1.bf16.msra.mxu0 %v437
    %459 = vmatprep.subr.bf16.mxu0 %v440
    %460 = vmatpush1.bf16.msra.mxu0 %v439
    %461 = vmatprep.subr.bf16.mxu0 0
    %462 = vmatpush1.bf16.msra.mxu0 0
    %463 = vmatprep.subr.bf16.mxu0 0
    %464 = vmatpush1.bf16.msra.mxu0 0
    %465 = vmatprep.subr.bf16.mxu0 0
    %466 = vmatpush1.bf16.msra.mxu0 0
    %467 = vmatprep.subr.bf16.mxu0 0
    %468 = vmatpush1.bf16.msra.mxu0 0
    %469 = vmatprep.subr.bf16.mxu0 0
    %470 = vmatpush1.bf16.msra.mxu0 0
    %471 = vmatprep.subr.bf16.mxu0 0
    %472 = vmatpush1.bf16.msra.mxu0 0
    %473 = vmatprep.subr.bf16.mxu0 0
    %474 = vmatpush1.bf16.msra.mxu0 0
    %475 = vmatprep.subr.bf16.mxu0 0
    %476 = vmatpush1.bf16.msra.mxu0 0
    %477 = vmatprep.subr.bf16.mxu0 0
    %478 = vmatpush1.bf16.msra.mxu0 0
    %479 = vmatprep.subr.bf16.mxu0 0
    %480 = vmatpush1.bf16.msra.mxu0 0
    %481 = vmatprep.subr.bf16.mxu0 0
    %482 = vmatpush1.bf16.msra.mxu0 0
    %483 = vmatprep.subr.bf16.mxu0 0
    %484 = vmatpush1.bf16.msra.mxu0 0
    %485 = vmatprep.mubr.bf16.mxu0 0
    %486 = vmatmul.mubr.bf16.gmra.mrb[0].mxu0 %v451
    %v487 = vpop.f32.mrb[0].mxu0
    %v488 = vadd.f32 %v402, %v487
    %v489 = vpop.f32.mrb[0].mxu0
    %v490 = vadd.f32 %v406, %v489
    %v491 = vpop.f32.mrb[0].mxu0
    %v492 = vpop.f32.mrb[0].mxu0
    %493 = vdwg.mxu0
    %v494 = vpack.c.bf16 %v488, %v488
    %v495 = vpack.c.bf16 %v490, %v490
    %v498 = vcombine.low %v494, %v495
    %v500 = vunpack.c.l.s4 1966171168
    %v501 = vunpack.c.0.s8 %v500
    %v502 = vlaneseq
    %v503 = vshrl.u32 %v502, 7
    %v504 = vsub.s32 %v501, %v503
    %v505 = vrot.slane %v498, %v504
    %v506 = vcombine.high %v505, %v505
    %v508 = vunpack.c.l.s4 1966171168
    %v509 = vunpack.c.0.s8 %v508
    %v510 = vlaneseq
    %v511 = vshrl.u32 %v510, 7
    %v512 = vsub.s32 %v509, %v511
    %v513 = vrot.slane %v505, %v512
    %v515 = vunpack.c.l.s4 1966171168
    %v516 = vunpack.c.0.s8 %v515
    %v517 = vlaneseq
    %v518 = vshrl.u32 %v517, 7
    %v519 = vsub.s32 %v516, %v518
    %v520 = vrot.slane %v506, %v519
    %v521 = vcombine.high %v513, %v513
    %v522 = vcombine.high %v520, %v520
    %527 = vst [vmem:[#allocation6] sm:$0x3] %v513
    %528 = vst [vmem:[#allocation6 + $0x2] sm:$0x3] %v520
    %529 = vst [vmem:[#allocation6 + $0x4] sm:$0x3] %v521
    %530 = vst [vmem:[#allocation6 + $0x6] sm:$0x3] %v522
    // Predicated region
    $region30: #{tpu_custom_call.1} parent=1 // pred_check
      _
    $region31: #{tpu_custom_call.1} parent=1 // pred_check_branch
      %532 = sbr.rel (0) target = $region33
    $region32: #{tpu_custom_call.1} parent=1 // pred_region
      %s534 = ssub.s32 64, 16
      %535 = vsyncadd [#allocation4], %s534
      %s536 = sshll.u32 [#allocation5], 4
      %s537 = int_to_ptr.vmem [resolvable:$true] %s536
      %542 = dma.vmem_to_hbm [thread:$0]  %s537, 16, %s6, [#allocation4], 16, 16, 1
    $region33: #{tpu_custom_call.1} parent=1 // pred_fallthru
      _
    // Predicated region
    $region34: #{tpu_custom_call.1} parent=1 // pred_check
      _
    $region35: #{tpu_custom_call.1} parent=1 // pred_check_branch
      %544 = sbr.rel (0) target = $region37
    $region36: #{tpu_custom_call.1} parent=1 // pred_region
      %s546 = ssub.s32 128, 32
      %547 = vsyncadd [#allocation7], %s546
      %s548 = sshll.u32 [#allocation6], 4
      %s549 = int_to_ptr.vmem [resolvable:$true] %s548
      %554 = dma.vmem_to_hbm [thread:$0]  %s549, 32, %s7, [#allocation7], 32, 32, 2
    $region37: #{tpu_custom_call.1} parent=1 // pred_fallthru
      _
    // Predicated region
    $region38: #{tpu_custom_call.1} parent=1 // pred_check
      _
    $region39: #{tpu_custom_call.1} parent=1 // pred_check_branch
      %556 = sbr.rel (0) target = $region41
    $region40: #{tpu_custom_call.1} parent=1 // pred_region
      %557 = dma.done [#allocation4], 64
    $region41: #{tpu_custom_call.1} parent=1 // pred_fallthru
      _
    // Predicated region
    $region42: #{tpu_custom_call.1} parent=1 // pred_check
      _
    $region43: #{tpu_custom_call.1} parent=1 // pred_check_branch
      %559 = sbr.rel (0) target = $region45
    $region44: #{tpu_custom_call.1} parent=1 // pred_region
      %560 = dma.done [#allocation7], 128
    $region45: #{tpu_custom_call.1} parent=1 // pred_fallthru
      _
    %561 = vsyncpa [#allocation3], 1
    %562 = vsyncpa [#allocation4], 1
    %563 = vsyncpa [#allocation7], 1

</llo_original>
